<compile_context>
chip_gen: v5e
topology: v5e:2x2
jax: 0.10.0
libtpu: 0.0.40
codegen_flags: <defaults>
</compile_context>

<pallas_src>
import jax
import jax.numpy as jnp
from jax.experimental import pallas as pl
from jax.experimental.pallas import tpu as pltpu


def _round_up(x: int, m: int) -> int:
    return (x + m - 1) // m * m


def _cdiv(a: int, b: int) -> int:
    return (a + b - 1) // b


# ---------------------------- tuning constants ------------------------------

_TARGET_BLOCK_BYTES = 4 << 20       # ~4 MiB f32 attenuation block per grid step
_SPLIT_MIN_BLOCK_BYTES = 2 << 20    # only split a single block if halves stay >= 2 MiB
_FUSED_LIVE_VMEM_BUDGET = 24 << 20  # in+out, double-buffered, at the minimal 8-row tile
_VMEM_LIMIT_BYTES = 48 << 20        # explicit scoped-VMEM limit (safe on v5e/v6e/v7x)
_FALLBACK_TILE_T = 2048             # lane tile for the (rare) long-series two-pass path


# ---------------------------- fused single pass ------------------------------

def _fused_rain_kernel(c_ref, ia_ref, att_ref, out_ref):
    # c_ref / ia_ref: (TL, 1) per-link constants  c = 1/(L*k),  1/alpha
    # att_ref / out_ref: (TL, T) attenuation / rain (full time axis resident)
    att = att_ref[...]
    baseline = jnp.min(att, axis=-1, keepdims=True)      # per-link min (XLU)
    excess = jnp.maximum(att - baseline, 0.0)             # relu(A - baseline)
    ratio = jnp.maximum(excess * c_ref[...], 1e-12)        # excess / (L * k)
    rain = jnp.exp(ia_ref[...] * jnp.log(ratio))           # ratio ** (1/alpha)  (EUP)
    out_ref[...] = jnp.where(excess > 0.0, rain, 0.0).astype(out_ref.dtype)


# --------------------- two-pass fallback (very long T) -----------------------

def _make_baseline_min_kernel(t: int, tile_t: int):
    grid_t = _cdiv(t, tile_t)
    tail = t - (grid_t - 1) * tile_t   # valid columns in the last time block

    def kernel(att_ref, min_ref):
        @pl.when(pl.program_id(1) == 0)
        def _():
            min_ref[...] = jnp.full(min_ref.shape, jnp.inf, min_ref.dtype)

        att = att_ref[...]
        if tail != tile_t:
            # Boundary-block reads in the time tail are undefined garbage once
            # padding is removed -> mask them out of the min reduction.
            j = pl.program_id(1)
            col = jax.lax.broadcasted_iota(jnp.int32, att.shape, 1)
            valid = jnp.where(j == grid_t - 1, tail, tile_t)
            att = jnp.where(col < valid, att, jnp.inf)

        tile_min = jnp.min(att, axis=-1, keepdims=True)
        min_ref[...] = jnp.minimum(min_ref[...], tile_min)

    return kernel


def _rain_kernel(base_ref, c_ref, ia_ref, att_ref, out_ref):
    # Elementwise power-law pass; OOB boundary writes are discarded, so no
    # masking is needed here.
    att = att_ref[...]
    excess = jnp.maximum(att - base_ref[...], 0.0)
    ratio = jnp.maximum(excess * c_ref[...], 1e-12)
    rain = jnp.exp(ia_ref[...] * jnp.log(ratio))
    out_ref[...] = jnp.where(excess > 0.0, rain, 0.0).astype(out_ref.dtype)


# ---------------------------- tiling heuristics ------------------------------

def _choose_link_tile(n_links: int, row_bytes: int, target_bytes: int) -> int:
    """Pick the link-tile size (multiple of 8, or the full link extent)."""
    n8 = _round_up(n_links, 8)
    tile = max(8, (target_bytes // max(row_bytes, 1)) // 8 * 8)
    if tile < n8:
        # tile <= n8 - 8 < n_links  ->  grid_links >= 2 automatically.
        return tile
    # Everything fits in one ~<=4 MiB block.  Split into two link blocks only
    # if both halves stay >= 2 MiB (keeps v7x's 2 TCs fed without dropping
    # below the high-roofline block-size regime; harmless on 1-TC chips).
    if n_links * row_bytes >= 2 * _SPLIT_MIN_BLOCK_BYTES and n8 >= 16:
        return _round_up(_cdiv(n8, 2), 8)
    return n_links   # single block; block dims == full array dims is allowed


# ---------------- Wrapper (== forward of InferMultipleCMLs) ------------------

def infer_multiple_cmls(attenuation, frequency_ghz, length_km):
    """Batched cml2rain over a link set.

    attenuation:   (N, T) float32
    frequency_ghz: (N,)   float32  (link metadata)
    length_km:     (N,)   float32  (link metadata)
    returns:       (N, T) float32 rain estimates (== torch.stack of flattened
                   per-link results along dim 0)
    """
    attenuation = jnp.asarray(attenuation, jnp.float32)
    n_links, t = attenuation.shape
    if n_links == 0:
        return jnp.zeros((0, t), jnp.float32)

    # Deterministic ITU-style power-law coefficients from metadata (O(N) glue),
    # folded so the kernel needs only one multiply per element.
    freq = jnp.asarray(frequency_ghz, jnp.float32)
    length = jnp.asarray(length_km, jnp.float32)
    k = 1.3e-4 * freq ** 2.3
    alpha = 1.6 - 0.015 * freq
    c = (1.0 / (length * k)).reshape(n_links, 1)
    inv_alpha = (1.0 / alpha).reshape(n_links, 1)

    t_lane = _round_up(t, 128)          # VMEM lane padding of the last dim
    row_bytes = t_lane * 4

    # ---- fused single pass: grid over links only, full time axis resident ---
    if 4 * 8 * row_bytes <= _FUSED_LIVE_VMEM_BUDGET:
        tile_links = _choose_link_tile(n_links, row_bytes, _TARGET_BLOCK_BYTES)
        grid_links = _cdiv(n_links, tile_links)
        return pl.pallas_call(
            _fused_rain_kernel,
            out_shape=jax.ShapeDtypeStruct((n_links, t), jnp.float32),
            grid_spec=pltpu.PrefetchScalarGridSpec(
                num_scalar_prefetch=0,
                grid=(grid_links,),
                in_specs=[
                    pl.BlockSpec((tile_links, 1), lambda i: (i, 0)),   # c
                    pl.BlockSpec((tile_links, 1), lambda i: (i, 0)),   # 1/alpha
                    pl.BlockSpec((tile_links, t), lambda i: (i, 0)),   # attenuation
                ],
                out_specs=pl.BlockSpec((tile_links, t), lambda i: (i, 0)),
            ),
            compiler_params=pltpu.CompilerParams(
                dimension_semantics=("parallel",),
                vmem_limit_bytes=_VMEM_LIMIT_BYTES),
        )(c, inv_alpha, attenuation)

    # ---- fallback for extremely long series: tiled min pass + rain pass -----
    tile_t = _FALLBACK_TILE_T
    tile_links = _choose_link_tile(n_links, tile_t * 4, _TARGET_BLOCK_BYTES)
    grid_links = _cdiv(n_links, tile_links)
    grid_t = _cdiv(t, tile_t)

    baseline = pl.pallas_call(
        _make_baseline_min_kernel(t, tile_t),
        out_shape=jax.ShapeDtypeStruct((n_links, 1), jnp.float32),
        grid_spec=pltpu.PrefetchScalarGridSpec(
            num_scalar_prefetch=0,
            grid=(grid_links, grid_t),
            in_specs=[pl.BlockSpec((tile_links, tile_t), lambda i, j: (i, j))],
            out_specs=pl.BlockSpec((tile_links, 1), lambda i, j: (i, 0)),
        ),
        compiler_params=pltpu.CompilerParams(
            dimension_semantics=("parallel", "arbitrary"),
            vmem_limit_bytes=_VMEM_LIMIT_BYTES),
    )(attenuation)

    return pl.pallas_call(
        _rain_kernel,
        out_shape=jax.ShapeDtypeStruct((n_links, t), jnp.float32),
        grid_spec=pltpu.PrefetchScalarGridSpec(
            num_scalar_prefetch=0,
            grid=(grid_links, grid_t),
            in_specs=[
                pl.BlockSpec((tile_links, 1), lambda i, j: (i, 0)),      # baseline
                pl.BlockSpec((tile_links, 1), lambda i, j: (i, 0)),      # c
                pl.BlockSpec((tile_links, 1), lambda i, j: (i, 0)),      # 1/alpha
                pl.BlockSpec((tile_links, tile_t), lambda i, j: (i, j)),  # attenuation
            ],
            out_specs=pl.BlockSpec((tile_links, tile_t), lambda i, j: (i, j)),
        ),
        compiler_params=pltpu.CompilerParams(
            dimension_semantics=("parallel", "parallel"),
            vmem_limit_bytes=_VMEM_LIMIT_BYTES),
    )(baseline, c, inv_alpha, attenuation)


# ---------- Plain-JAX reference mirroring the torch per-link loop + stack ---

def _reference(attenuation, frequency_ghz, length_km):
    k = 1.3e-4 * frequency_ghz ** 2.3
    alpha = 1.6 - 0.015 * frequency_ghz
    rows = []
    for i in range(attenuation.shape[0]):
        a = attenuation[i]
        baseline = jnp.min(a)
        excess = jnp.maximum(a - baseline, 0.0)
        spec = excess / length_km[i]
        ratio = jnp.maximum(spec / k[i], 1e-12)
        rain = jnp.where(excess > 0.0, jnp.exp(jnp.log(ratio) / alpha[i]), 0.0)
        rows.append(rain.flatten())
    return jnp.stack(rows, axis=0)


if __name__ == "__main__":
    key = jax.random.PRNGKey(0)
    k_att, k_freq, k_len = jax.random.split(key, 3)

    # Small link set; shapes deliberately NOT tile-aligned to exercise the
    # boundary-block (no-padding) path.
    n_links, t = 12, 200

    attenuation = (
        2.0 + jax.random.uniform(k_att, (n_links, t), minval=0.0, maxval=5.0)
    ).astype(jnp.float32)
    frequency_ghz = jax.random.uniform(
        k_freq, (n_links,), minval=15.0, maxval=40.0).astype(jnp.float32)
    length_km = jax.random.uniform(
        k_len, (n_links,), minval=1.0, maxval=10.0).astype(jnp.float32)

    out = infer_multiple_cmls(attenuation, frequency_ghz, length_km)
    out = jax.block_until_ready(out)

    ref = _reference(attenuation, frequency_ghz, length_km)
    assert out.shape == (n_links, t)
    assert jnp.allclose(out, ref, rtol=1e-4, atol=1e-4), "mismatch vs reference"

    print("KERNEL_OK")
</pallas_src>

<mosaic_0001>
module attributes {stable_mosaic.version = 11 : i64} {
  func.func @_fused_rain_kernel(%arg0: i32, %arg1: memref<12x1xf32, #tpu.memory_space<vmem>>, %arg2: memref<12x1xf32, #tpu.memory_space<vmem>>, %arg3: memref<12x200xf32, #tpu.memory_space<vmem>>, %arg4: memref<12x200xf32, #tpu.memory_space<vmem>>) attributes {dimension_semantics = [#tpu.dimension_semantics<parallel>], iteration_bounds = array<i64: 1>, scalar_prefetch = 0 : i64, scratch_operands = 0 : i64, tpu.core_type = #tpu.core_type<tc>, window_params = [{transform_indices = @transform_0, window_bounds = array<i64: 12, 1>}, {transform_indices = @transform_1, window_bounds = array<i64: 12, 1>}, {transform_indices = @transform_2, window_bounds = array<i64: 12, 200>}, {transform_indices = @transform_3, window_bounds = array<i64: 12, 200>}]} {
    %c0 = arith.constant 0 : index
    %c0_0 = arith.constant 0 : index
    %0 = vector.load %arg3[%c0, %c0_0] : memref<12x200xf32, #tpu.memory_space<vmem>>, vector<12x200xf32>
    %cst = arith.constant dense<0x7F800000> : vector<12xf32>
    %1 = vector.multi_reduction <minimumf>, %0, %cst [1] : vector<12x200xf32> to vector<12xf32>
    %2 = vector.shape_cast %1 : vector<12xf32> to vector<12x1xf32>
    %3 = vector.broadcast %2 : vector<12x1xf32> to vector<12x200xf32>
    %4 = arith.subf %0, %3 : vector<12x200xf32>
    %cst_1 = arith.constant 0.000000e+00 : f32
    %5 = vector.broadcast %cst_1 : f32 to vector<12x200xf32>
    %6 = arith.maximumf %4, %5 : vector<12x200xf32>
    %c0_2 = arith.constant 0 : index
    %c0_3 = arith.constant 0 : index
    %7 = vector.load %arg1[%c0_2, %c0_3] : memref<12x1xf32, #tpu.memory_space<vmem>>, vector<12x1xf32>
    %8 = vector.broadcast %7 : vector<12x1xf32> to vector<12x200xf32>
    %9 = arith.mulf %6, %8 : vector<12x200xf32>
    %cst_4 = arith.constant 9.99999996E-13 : f32
    %10 = vector.broadcast %cst_4 : f32 to vector<12x200xf32>
    %11 = arith.maximumf %9, %10 : vector<12x200xf32>
    %c0_5 = arith.constant 0 : index
    %c0_6 = arith.constant 0 : index
    %12 = vector.load %arg2[%c0_5, %c0_6] : memref<12x1xf32, #tpu.memory_space<vmem>>, vector<12x1xf32>
    %13 = math.log %11 : vector<12x200xf32>
    %14 = vector.broadcast %12 : vector<12x1xf32> to vector<12x200xf32>
    %15 = arith.mulf %14, %13 : vector<12x200xf32>
    %16 = math.exp %15 : vector<12x200xf32>
    %cst_7 = arith.constant 0.000000e+00 : f32
    %17 = vector.broadcast %cst_7 : f32 to vector<12x200xf32>
    %18 = arith.cmpf ogt, %6, %17 : vector<12x200xf32>
    %cst_8 = arith.constant 0.000000e+00 : f32
    %19 = vector.broadcast %cst_8 : f32 to vector<12x200xf32>
    %20 = arith.select %18, %16, %19 : vector<12x200xi1>, vector<12x200xf32>
    %c0_9 = arith.constant 0 : index
    %c0_10 = arith.constant 0 : index
    %21 = vector.load %arg4[%c0_9, %c0_10] : memref<12x200xf32, #tpu.memory_space<vmem>>, vector<12x200xf32>
    tpu.vector_store %arg4[%c0_9, %c0_10], %20 {strides = array<i32>} : memref<12x200xf32, #tpu.memory_space<vmem>>, vector<12x200xf32>,
    return
  }
  func.func @transform_0(%arg0: i32) -> (i32, i32) {
    %c0_i32 = arith.constant 0 : i32
    %c0_i32_0 = arith.constant 0 : i32
    return %arg0, %c0_i32 : i32, i32
  }
  func.func @transform_1(%arg0: i32) -> (i32, i32) {
    %c0_i32 = arith.constant 0 : i32
    %c0_i32_0 = arith.constant 0 : i32
    return %arg0, %c0_i32 : i32, i32
  }
  func.func @transform_2(%arg0: i32) -> (i32, i32) {
    %c0_i32 = arith.constant 0 : i32
    %c0_i32_0 = arith.constant 0 : i32
    return %arg0, %c0_i32 : i32, i32
  }
  func.func @transform_3(%arg0: i32) -> (i32, i32) {
    %c0_i32 = arith.constant 0 : i32
    %c0_i32_0 = arith.constant 0 : i32
    return %arg0, %c0_i32 : i32, i32
  }
}

</mosaic_0001>

<llo_original>
// kernel: tpu_custom_call.1
$region0: #{tpu_custom_call.1}
  #allocation0 [shape = 'u32[]', space=smem, size = 0x4, offset = 0x4, fixed_abs, tag = 'smem constant byte address 0x4 - core index']
  #allocation1 [shape = 'u32[72,128]{1,0:T(1,128)}', space=vmem, size = 0x9000, scoped, tag = 'internal scratch']
  %s0 = inlined_call_operand.vmem [shape: f32[12,1], index: 0, kind: input, shape index: {}]
  %s1 = inlined_call_operand.vmem [shape: f32[12,1], index: 1, kind: input, shape index: {}]
  %s2 = inlined_call_operand.vmem [shape: f32[12,200], index: 2, kind: input, shape index: {}]
  %s3 = inlined_call_operand.hbm [shape: f32[12,200], index: 3, kind: output, shape index: {}]
  %s4 = sld [smem:[#allocation0]]
  $region22: #{tpu_custom_call.1} parent=0
    _
  %s6 = ssub.s32 1, %s4
  %s7 = scalar_select 0, %s6, %s4
  $region1: #{tpu_custom_call.1} parent=0
    #allocation2 [shape = 'u8[16384]{0}', space=vmem, size = 0x4000, scoped, tag = 'output window, operand 0, single buffered']
    #allocation3 [shape = 's32[1]{0}', space=sflag, size = 0x4, scoped, tag = 'scoped memory for tpu_custom_call.1']
    %8 = vsyncpa [#allocation3], 0
    // Predicated region
    $region2: #{tpu_custom_call.1} parent=1 // pred_check
      _
    $region3: #{tpu_custom_call.1} parent=1 // pred_check_branch
      %10 = sbr.rel (0) target = $region5
    $region4: #{tpu_custom_call.1} parent=1 // pred_region
      _
    $region5: #{tpu_custom_call.1} parent=1 // pred_fallthru
      _
    // Predicated region
    $region6: #{tpu_custom_call.1} parent=1 // pred_check
      _
    $region7: #{tpu_custom_call.1} parent=1 // pred_check_branch
      %12 = sbr.rel (0) target = $region9
    $region8: #{tpu_custom_call.1} parent=1 // pred_region
      _
    $region9: #{tpu_custom_call.1} parent=1 // pred_fallthru
      _
    // Predicated region
    $region10: #{tpu_custom_call.1} parent=1 // pred_check
      _
    $region11: #{tpu_custom_call.1} parent=1 // pred_check_branch
      %14 = sbr.rel (0) target = $region13
    $region12: #{tpu_custom_call.1} parent=1 // pred_region
      _
    $region13: #{tpu_custom_call.1} parent=1 // pred_fallthru
      _
    %v15 = vld [vmem:[%s2] sm:$0xff]
    %v16 = vld [vmem:[%s2 + $0x8] sm:$0xff]
    %v17 = vld [vmem:[%s2 + $0x10] sm:$0xf]
    %v18 = vld [vmem:[%s2 + $0x18] sm:$0xf]
    %vm19 = vcmask 588800
    %v20 = vsel %vm19, %v16, inf
    %v21 = vmin.f32 %v15, %v20
    %22 = vmin.xlane.f32.xlu0 %v21
    %v23 = vpop.xlane.xlu0 %22
    %vm24 = vcmask 1043456
    %v25 = vsel %vm24, %v17, inf
    %vm26 = vcmask 584704
    %v27 = vsel %vm26, %v18, inf
    %v28 = vmin.f32 %v25, %v27
    %29 = vmin.xlane.f32.xlu0 %v28
    %v30 = vpop.xlane.xlu0 %29
    %v31 = vsub.f32 %v15, %v23
    %v32 = vsub.f32 %v16, %v23
    %v33 = vsub.f32 %v17, %v30
    %v34 = vsub.f32 %v18, %v30
    %v35 = vmax.f32 %v31, 0.0
    %v36 = vmax.f32 %v32, 0.0
    %v37 = vmax.f32 %v33, 0.0
    %v38 = vmax.f32 %v34, 0.0
    %v39 = vld [vmem:[%s0] sm:$0xff]
    %v40 = vld [vmem:[%s0 + $0x8] sm:$0xf]
    %42 = vset.pattern.permute.xlu0 0
    %43 = vperm.xlu0 %42, %v39
    %v44 = vpop.permute.xlu0 %43
    %47 = vset.pattern.permute.xlu0 0
    %48 = vperm.xlu0 %47, %v40
    %v49 = vpop.permute.xlu0 %48
    %v51 = vmul.f32 %v35, %v44
    %v52 = vmul.f32 %v36, %v44
    %v53 = vmul.f32 %v37, %v49
    %v54 = vmul.f32 %v38, %v49
    %v55 = vmax.f32 %v51, 1e-12
    %v56 = vmax.f32 %v52, 1e-12
    %v57 = vmax.f32 %v53, 1e-12
    %v58 = vmax.f32 %v54, 1e-12
    %v59 = vld [vmem:[%s1] sm:$0xff]
    %v60 = vld [vmem:[%s1 + $0x8] sm:$0xf]
    %v61 = vlog2.pop %v55
    %v62 = vmul.f32 %v61, 0.6931472
    %v63 = vlog2.pop %v56
    %v64 = vmul.f32 %v63, 0.6931472
    %v65 = vlog2.pop %v57
    %v66 = vmul.f32 %v65, 0.6931472
    %v67 = vlog2.pop %v58
    %v68 = vmul.f32 %v67, 0.6931472
    %70 = vset.pattern.permute.xlu0 0
    %71 = vperm.xlu0 %70, %v59
    %v72 = vpop.permute.xlu0 %71
    %75 = vset.pattern.permute.xlu0 0
    %76 = vperm.xlu0 %75, %v60
    %v77 = vpop.permute.xlu0 %76
    %v79 = vmul.f32 %v72, %v62
    %v80 = vmul.f32 %v72, %v64
    %v81 = vmul.f32 %v77, %v66
    %v82 = vmul.f32 %v77, %v68
    %v83 = vmul.f32 %v79, 1.442695
    %v84 = vpow.pop %v83
    %v85 = vmul.f32 %v80, 1.442695
    %v86 = vpow.pop %v85
    %v87 = vmul.f32 %v81, 1.442695
    %v88 = vpow.pop %v87
    %v89 = vmul.f32 %v82, 1.442695
    %v90 = vpow.pop %v89
    %vm91 = vcmp.gt.f32.partialorder %v35, 0.0
    %vm92 = vcmp.gt.f32.partialorder %v36, 0.0
    %vm93 = vcmp.gt.f32.partialorder %v37, 0.0
    %vm94 = vcmp.gt.f32.partialorder %v38, 0.0
    %v95 = vsel %vm91, %v84, 0.0
    %v96 = vsel %vm92, %v86, 0.0
    %v97 = vsel %vm93, %v88, 0.0
    %v98 = vsel %vm94, %v90, 0.0
    %99 = vst [vmem:[#allocation2] sm:$0xff] %v95
    %100 = vst.msk [vmem:[#allocation2 + $0x8] sm:$0xff] %vm19, %v96
    %101 = vst [vmem:[#allocation2 + $0x10] sm:$0xf] %v97
    %102 = vst.msk [vmem:[#allocation2 + $0x18] sm:$0xf] %vm26, %v98
    // Predicated region
    $region14: #{tpu_custom_call.1} parent=1 // pred_check
      _
    $region15: #{tpu_custom_call.1} parent=1 // pred_check_branch
      %104 = sbr.rel (0) target = $region17
    $region16: #{tpu_custom_call.1} parent=1 // pred_region
      %106 = vsyncadd [#allocation3], 0
      %s107 = sshll.u32 [#allocation2], 4
      %s108 = int_to_ptr.vmem [resolvable:$true] %s107
      %s109 = sshll.u32 %s3, 4
      %s110 = int_to_ptr.hbm [resolvable:$true] %s109
      %115 = dma.vmem_to_hbm [thread:$0]  %s108, 512, %s110, [#allocation3], 256, 256, 16
    $region17: #{tpu_custom_call.1} parent=1 // pred_fallthru
      _
    // Predicated region
    $region18: #{tpu_custom_call.1} parent=1 // pred_check
      _
    $region19: #{tpu_custom_call.1} parent=1 // pred_check_branch
      %117 = sbr.rel (0) target = $region21
    $region20: #{tpu_custom_call.1} parent=1 // pred_region
      %119 = dma.done [#allocation3], 512
    $region21: #{tpu_custom_call.1} parent=1 // pred_fallthru
      _
    %120 = vsyncpa [#allocation3], 1

</llo_original>
